<compile_context>
chip_gen: v7x
topology: tpu7x:2x2x1
jax: 0.10.0
libtpu: 0.0.40
codegen_flags: <defaults>
</compile_context>

<pallas_src>
import functools

import jax
import jax.numpy as jnp
from jax import lax
from jax.experimental import pallas as pl
from jax.experimental.pallas import tpu as pltpu


def _token_reduction_embedding_kernel(ids_ref, w_ref, out_ref, acc_ref, *,
                                      r, inv_r, v_total, mxu_dtype):
    """One grid step: fused embed + factor-r mean for one (group-tile, V-tile).

    ids_ref: (blk, r) int32   member token ids for blk output groups
    w_ref:   (tv, H)          embedding-table tile (tv == V when untiled)
    out_ref: (blk, H)         pooled embeddings (written on the last V step)
    acc_ref: (blk, H) f32     VMEM accumulator across the V-streaming axis
    """
    blk = out_ref.shape[0]
    tv = w_ref.shape[0]
    k = pl.program_id(1)

    @pl.when(k == 0)
    def _():
        acc_ref[...] = jnp.zeros_like(acc_ref)

    # Reduced one-hot M[t, v] = (1/r) * #{j : ids[t, j] == row0 + v}, built
    # directly in the MXU-input dtype: r fused compare/add/selects, no int32
    # or f32 intermediates and no trailing scale pass.
    row0 = k * tv
    iota_v = row0 + lax.broadcasted_iota(jnp.int32, (blk, tv), 1)
    ids = ids_ref[...]                                   # (blk, r) int32
    inv = jnp.asarray(inv_r, dtype=mxu_dtype)
    m = None
    for j in range(r):                                   # r: tiny static constant
        hit = iota_v == ids[:, j:j + 1]                  # (blk, tv) mask
        if m is None:
            m = jnp.where(hit, inv, jnp.zeros((), mxu_dtype))
        else:
            m = jnp.where(hit, m + inv, m)               # handles repeated ids

    w = w_ref[...]
    if v_total % tv:
        # Ragged last table tile: zero the out-of-range rows so stale VMEM
        # contents (possibly NaN) cannot leak through 0 * NaN in the MXU.
        rows = row0 + lax.broadcasted_iota(jnp.int32, (tv, 1), 0)
        w = jnp.where(rows < v_total, w, jnp.zeros_like(w))

    # Natively-oriented (blk, tv) x (tv, H) contraction; bf16 operands take the
    # MXU fast path, accumulation stays f32.
    acc_ref[...] += jnp.dot(m, w, preferred_element_type=jnp.float32)

    @pl.when(k == pl.num_programs(1) - 1)
    def _():
        out_ref[...] = acc_ref[...].astype(out_ref.dtype)


def token_reduction_embedding(ids, emb_table, *, training=True, reduction_factor=2,
                              block_groups=256, mxu_dtype=None,
                              table_vmem_budget_bytes=None):
    """ids: [B, S] integer tokens; emb_table: [V, H].

    Returns [B, S // r, H] in training mode (factor-r adjacent-token mean fused
    into the gather) or [B, S, H] in eval mode, in emb_table.dtype.
    """
    B, S = ids.shape
    V, H = emb_table.shape
    r = int(reduction_factor) if training else 1
    if S % r != 0:
        raise ValueError(
            f"sequence length {S} must be divisible by reduction_factor {r}")
    S_out = S // r
    n_groups = B * S_out

    out_dtype = emb_table.dtype
    mxu_dtype = (jnp.dtype(mxu_dtype) if mxu_dtype is not None
                 else jnp.dtype(emb_table.dtype))
    m_item = mxu_dtype.itemsize
    out_item = jnp.dtype(out_dtype).itemsize

    # Member-j ids, one output group per row (the tiny r axis sits on lanes;
    # its pad to one lane-tile in VMEM is negligible).
    ids_grp = ids.reshape(n_groups, r).astype(jnp.int32)
    # One-time host-side cast so the kernel never re-casts the table per step.
    table_in = emb_table if emb_table.dtype == mxu_dtype else emb_table.astype(mxu_dtype)

    # Output-group tiling; no host padding -- Pallas masks ragged last blocks.
    if n_groups <= block_groups:
        blk = n_groups
    else:
        blk = max(8, (int(block_groups) // 8) * 8)
    n_steps = pl.cdiv(n_groups, blk)

    # ---- generation-aware VMEM budget -------------------------------------
    try:
        vmem_cap = int(pltpu.get_tpu_info().vmem_capacity_bytes)
    except Exception:
        vmem_cap = 64 * 1024 * 1024          # conservative fallback
    usable = max(32 * 1024 * 1024, vmem_cap - 16 * 1024 * 1024)

    fixed = (2 * blk * 128 * 4               # ids blocks (lane-padded), 2 buffers
             + 2 * blk * H * out_item        # output blocks
             + 2 * blk * H * 4               # f32 accumulator + matmul result
             + (2 << 20))                    # compiler-internal slack
    table_budget = (int(table_vmem_budget_bytes) if table_vmem_budget_bytes is not None
                    else usable - fixed)

    if V * H * m_item + blk * V * m_item <= table_budget:
        # Whole table resident in VMEM, single-buffered (fetched once per core).
        tv, n_v_steps = V, 1
        table_spec = pl.BlockSpec(memory_space=pltpu.MemorySpace.VMEM)
        est = fixed + V * H * m_item + blk * V * m_item
    else:
        # Stream the table over a second ("arbitrary") grid axis in (tv, H)
        # double-buffered tiles, accumulating partial products in f32 VMEM.
        tv = table_budget // ((2 * H + blk) * m_item)
        tv = int(min(V, (tv // 8) * 8))
        if tv < 8:
            raise ValueError(
                "embedding-table tile does not fit the VMEM budget; "
                "TODO(synk): use the HBM DMA row-gather path for this size")
        n_v_steps = pl.cdiv(V, tv)
        table_spec = pl.BlockSpec((tv, H), lambda i, k: (k, 0))
        est = fixed + 2 * tv * H * m_item + blk * tv * m_item
    vmem_limit = int(min(usable, max(32 * 1024 * 1024, est)))

    kernel = functools.partial(_token_reduction_embedding_kernel,
                               r=r, inv_r=1.0 / r, v_total=V, mxu_dtype=mxu_dtype)

    cost = pl.CostEstimate(
        flops=2 * (n_steps * blk) * (n_v_steps * tv) * H,
        transcendentals=0,
        bytes_accessed=int(V * H * m_item + n_groups * r * 4 + n_groups * H * out_item))

    out = pl.pallas_call(
        kernel,
        out_shape=jax.ShapeDtypeStruct((n_groups, H), out_dtype),
        grid=(n_steps, n_v_steps),
        in_specs=[
            pl.BlockSpec((blk, r), lambda i, k: (i, 0)),   # per-step ids block
            table_spec,                                    # resident or streamed
        ],
        out_specs=pl.BlockSpec((blk, H), lambda i, k: (i, 0)),
        scratch_shapes=[pltpu.VMEM((blk, H), jnp.float32)],
        compiler_params=pltpu.CompilerParams(
            # Group axis parallel (megacore); V-streaming reduction axis last.
            # TODO(synk): on v7x, splitting H (not groups) across the two cores
            # would halve the per-core table footprint.
            dimension_semantics=("parallel", "arbitrary"),
            vmem_limit_bytes=vmem_limit),
        cost_estimate=cost,
    )(ids_grp, table_in)

    return out.reshape(B, S_out, H)


if __name__ == "__main__":
    key = jax.random.PRNGKey(0)
    k_ids, k_ids2, k_w = jax.random.split(key, 3)

    B, S, V, H = 2, 16, 256, 128
    R = 2

    ids = jax.random.randint(k_ids, (B, S), 0, V, dtype=jnp.int32)
    emb_table = jax.random.normal(k_w, (V, H), dtype=jnp.float32) * 0.02

    # Pure-JAX reference.
    ref_emb = emb_table[ids]                                       # (B, S, H)
    ref_train = ref_emb.reshape(B, S // R, R, H).mean(axis=2)      # (B, S//R, H)

    # 1) Training-mode forward (embedding + token reduction), f32 table.
    out_train = jax.block_until_ready(
        token_reduction_embedding(ids, emb_table, training=True, reduction_factor=R))
    assert out_train.shape == (B, S // R, H)
    assert jnp.allclose(out_train, ref_train, atol=1e-5, rtol=1e-5)

    # 2) Eval-mode forward (embedding only).
    out_eval = jax.block_until_ready(
        token_reduction_embedding(ids, emb_table, training=False))
    assert out_eval.shape == (B, S, H)
    assert jnp.allclose(out_eval, ref_emb, atol=1e-5, rtol=1e-5)

    # 3) bf16 table -> bf16 one-hot build + bf16 MXU fast path.
    emb_bf16 = emb_table.astype(jnp.bfloat16)
    out_bf16 = jax.block_until_ready(
        token_reduction_embedding(ids, emb_bf16, training=True, reduction_factor=R))
    ref_bf16 = emb_bf16[ids].astype(jnp.float32).reshape(B, S // R, R, H).mean(axis=2)
    assert out_bf16.dtype == jnp.bfloat16
    assert jnp.allclose(out_bf16.astype(jnp.float32), ref_bf16, atol=1e-2, rtol=1e-2)

    # 4) Force the V-streaming path (table "too big" for the budget): multi-step
    #    reduction axis, f32 accumulator, ragged/masked last table tile.
    out_tiled = jax.block_until_ready(
        token_reduction_embedding(ids, emb_table, training=True, reduction_factor=R,
                                  table_vmem_budget_bytes=48 * 1024))
    assert jnp.allclose(out_tiled, ref_train, atol=1e-5, rtol=1e-5)

    # 5) Multi-block group axis with a ragged last output block (no host padding).
    S2 = 20
    ids2 = jax.random.randint(k_ids2, (B, S2), 0, V, dtype=jnp.int32)
    out_blk = jax.block_until_ready(
        token_reduction_embedding(ids2, emb_table, training=True, reduction_factor=R,
                                  block_groups=8))
    ref_blk = emb_table[ids2].reshape(B, S2 // R, R, H).mean(axis=2)
    assert out_blk.shape == (B, S2 // R, H)
    assert jnp.allclose(out_blk, ref_blk, atol=1e-5, rtol=1e-5)

    print("KERNEL_OK")
</pallas_src>

<mosaic_0001>
module attributes {stable_mosaic.version = 11 : i64} {
  func.func @_token_reduction_embedding_kernel(%arg0: i32, %arg1: i32, %arg2: memref<16x2xi32, #tpu.memory_space<vmem>>, %arg3: memref<256x128xf32, #tpu.memory_space<vmem>>, %arg4: memref<16x128xf32, #tpu.memory_space<vmem>>, %arg5: memref<16x128xf32, #tpu.memory_space<vmem>>) attributes {dimension_semantics = [#tpu.dimension_semantics<parallel>, #tpu.dimension_semantics<arbitrary>], iteration_bounds = array<i64: 1, 1>, scalar_prefetch = 0 : i64, scratch_operands = 1 : i64, tpu.core_type = #tpu.core_type<tc>, window_params = [{transform_indices = @transform_0, window_bounds = array<i64: 16, 2>}, {pipeline_mode = #tpu.pipeline_mode<synchronous>, transform_indices = @transform_1, window_bounds = array<i64: 256, 128>}, {transform_indices = @transform_2, window_bounds = array<i64: 16, 128>}]} {
    %c0_i32 = arith.constant 0 : i32
    %0 = arith.cmpi eq, %arg1, %c0_i32 : i32
    %1 = arith.extui %0 : i1 to i32
    %c0_i32_0 = arith.constant 0 : i32
    %2 = arith.cmpi ne, %1, %c0_i32_0 : i32
    scf.if %2 {
      %cst_13 = arith.constant 0.000000e+00 : f32
      %28 = vector.broadcast %cst_13 : f32 to vector<16x128xf32>
      %c0_14 = arith.constant 0 : index
      %c0_15 = arith.constant 0 : index
      %29 = vector.load %arg5[%c0_14, %c0_15] : memref<16x128xf32, #tpu.memory_space<vmem>>, vector<16x128xf32>
      tpu.vector_store %arg5[%c0_14, %c0_15], %28 {strides = array<i32>} : memref<16x128xf32, #tpu.memory_space<vmem>>, vector<16x128xf32>,
    } else {
    }
    %c256_i32 = arith.constant 256 : i32
    %3 = arith.muli %arg1, %c256_i32 : i32
    %4 = tpu.iota {dimensions = array<i32: 1>} : vector<16x256xi32>
    %5 = vector.broadcast %3 : i32 to vector<16x256xi32>
    %6 = arith.addi %5, %4 : vector<16x256xi32>
    %c0 = arith.constant 0 : index
    %c0_1 = arith.constant 0 : index
    %7 = vector.load %arg2[%c0, %c0_1] : memref<16x2xi32, #tpu.memory_space<vmem>>, vector<16x2xi32>
    %8 = vector.extract_strided_slice %7 {offsets = [0, 0], sizes = [16, 1], strides = [1, 1]} : vector<16x2xi32> to vector<16x1xi32>
    %9 = vector.broadcast %8 : vector<16x1xi32> to vector<16x256xi32>
    %10 = arith.cmpi eq, %6, %9 : vector<16x256xi32>
    %cst = arith.constant 5.000000e-01 : f32
    %cst_2 = arith.constant 0.000000e+00 : f32
    %11 = vector.broadcast %cst : f32 to vector<16x256xf32>
    %12 = vector.broadcast %cst_2 : f32 to vector<16x256xf32>
    %13 = arith.select %10, %11, %12 : vector<16x256xi1>, vector<16x256xf32>
    %14 = vector.extract_strided_slice %7 {offsets = [0, 1], sizes = [16, 1], strides = [1, 1]} : vector<16x2xi32> to vector<16x1xi32>
    %15 = vector.broadcast %14 : vector<16x1xi32> to vector<16x256xi32>
    %16 = arith.cmpi eq, %6, %15 : vector<16x256xi32>
    %cst_3 = arith.constant 5.000000e-01 : f32
    %17 = vector.broadcast %cst_3 : f32 to vector<16x256xf32>
    %18 = arith.addf %13, %17 : vector<16x256xf32>
    %19 = arith.select %16, %18, %13 : vector<16x256xi1>, vector<16x256xf32>
    %c0_4 = arith.constant 0 : index
    %c0_5 = arith.constant 0 : index
    %20 = vector.load %arg3[%c0_4, %c0_5] : memref<256x128xf32, #tpu.memory_space<vmem>>, vector<256x128xf32>
    %c0_6 = arith.constant 0 : index
    %c0_7 = arith.constant 0 : index
    %21 = vector.load %arg5[%c0_6, %c0_7] : memref<16x128xf32, #tpu.memory_space<vmem>>, vector<16x128xf32>
    %cst_8 = arith.constant dense<0.000000e+00> : vector<16x128xf32>
    %22 = tpu.matmul %19, %20, %cst_8 {dimension_numbers = #tpu.dot_dimension_numbers<[1], [0], [0], [1], [0, 0, 1, 1], [], []>} : vector<16x256xf32>, vector<256x128xf32>, vector<16x128xf32> -> vector<16x128xf32>
    %23 = arith.addf %21, %22 : vector<16x128xf32>
    %c0_9 = arith.constant 0 : index
    %c0_10 = arith.constant 0 : index
    %24 = vector.load %arg5[%c0_9, %c0_10] : memref<16x128xf32, #tpu.memory_space<vmem>>, vector<16x128xf32>
    tpu.vector_store %arg5[%c0_9, %c0_10], %23 {strides = array<i32>} : memref<16x128xf32, #tpu.memory_space<vmem>>, vector<16x128xf32>,
    %c0_i32_11 = arith.constant 0 : i32
    %25 = arith.cmpi eq, %arg1, %c0_i32_11 : i32
    %26 = arith.extui %25 : i1 to i32
    %c0_i32_12 = arith.constant 0 : i32
    %27 = arith.cmpi ne, %26, %c0_i32_12 : i32
    scf.if %27 {
      %c0_13 = arith.constant 0 : index
      %c0_14 = arith.constant 0 : index
      %28 = vector.load %arg5[%c0_13, %c0_14] : memref<16x128xf32, #tpu.memory_space<vmem>>, vector<16x128xf32>
      %c0_15 = arith.constant 0 : index
      %c0_16 = arith.constant 0 : index
      %29 = vector.load %arg4[%c0_15, %c0_16] : memref<16x128xf32, #tpu.memory_space<vmem>>, vector<16x128xf32>
      tpu.vector_store %arg4[%c0_15, %c0_16], %28 {strides = array<i32>} : memref<16x128xf32, #tpu.memory_space<vmem>>, vector<16x128xf32>,
    } else {
    }
    return
  }
  func.func @transform_0(%arg0: i32, %arg1: i32) -> (i32, i32) {
    %c0_i32 = arith.constant 0 : i32
    %c0_i32_0 = arith.constant 0 : i32
    return %arg0, %c0_i32 : i32, i32
  }
  func.func @transform_1(%arg0: i32, %arg1: i32) -> (i32, i32) {
    %c0_i32 = arith.constant 0 : i32
    %c0_i32_0 = arith.constant 0 : i32
    %c0_i32_1 = arith.constant 0 : i32
    return %c0_i32, %c0_i32_0 : i32, i32
  }
  func.func @transform_2(%arg0: i32, %arg1: i32) -> (i32, i32) {
    %c0_i32 = arith.constant 0 : i32
    %c0_i32_0 = arith.constant 0 : i32
    return %arg0, %c0_i32 : i32, i32
  }
}

</mosaic_0001>

<llo_original>
// kernel: tpu_custom_call.1
$region0: #{tpu_custom_call.1}
  #allocation0 [shape = 'u32[]', space=smem, size = 0x4, offset = 0x4, fixed_abs, tag = 'smem constant byte address 0x4 - core index']
  #allocation1 [shape = 'u32[144,128]{1,0:T(1,128)}', space=vmem, size = 0x12000, scoped, tag = 'internal scratch']
  #allocation2 [shape = 'f32[16,128]{1,0:T(8,128)}', space=vmem, size = 0x2000, scoped, tag = 'scratch operand']
  %s0 = inlined_call_operand.vmem [shape: s32[16,2], index: 0, kind: input, shape index: {}]
  %s1 = inlined_call_operand.hbm [shape: f32[256,128], index: 1, kind: input, shape index: {}]
  %s2 = inlined_call_operand.hbm [shape: f32[16,128], index: 2, kind: output, shape index: {}]
  %s3 = sld [smem:[#allocation0]]
  $region30: #{tpu_custom_call.1} parent=0
    _
  %s5 = ssub.s32 1, %s3
  %s6 = scalar_select 0, %s5, %s3
  $region1: #{tpu_custom_call.1} parent=0
    #allocation3 [shape = 'u8[131072]{0}', space=vmem, size = 0x20000, scoped, tag = 'input window, operand 1, single buffered']
    #allocation4 [shape = 's32[1]{0}', space=sflag, size = 0x4, scoped, tag = 'scoped memory for tpu_custom_call.1']
    #allocation5 [shape = 's32[1]{0}', space=sflag, size = 0x4, scoped, tag = 'scoped memory for tpu_custom_call.1']
    #allocation6 [shape = 'u8[8192]{0}', space=vmem, size = 0x2000, scoped, tag = 'output window, operand 0, single buffered']
    %7 = vsyncpa [#allocation4], 0
    %8 = vsyncpa [#allocation5], 0
    // Predicated region
    $region2: #{tpu_custom_call.1} parent=1 // pred_check
      _
    $region3: #{tpu_custom_call.1} parent=1 // pred_check_branch
      %10 = sbr.rel (0) target = $region5
    $region4: #{tpu_custom_call.1} parent=1 // pred_region
      _
    $region5: #{tpu_custom_call.1} parent=1 // pred_fallthru
      _
    // Predicated region
    $region6: #{tpu_custom_call.1} parent=1 // pred_check
      _
    $region7: #{tpu_custom_call.1} parent=1 // pred_check_branch
      %12 = sbr.rel (0) target = $region9
    $region8: #{tpu_custom_call.1} parent=1 // pred_region
      %s14 = ssub.s32 4096, 4096
      %15 = vsyncadd [#allocation4], %s14
      %s16 = sshll.u32 [#allocation3], 4
      %s17 = int_to_ptr.vmem [resolvable:$true] %s16
      %22 = dma.hbm_to_vmem [thread:$0]  %s1, 4096, %s17, [#allocation4], 128, 128, 8
    $region9: #{tpu_custom_call.1} parent=1 // pred_fallthru
      _
    // Predicated region
    $region10: #{tpu_custom_call.1} parent=1 // pred_check
      _
    $region11: #{tpu_custom_call.1} parent=1 // pred_check_branch
      %24 = sbr.rel (0) target = $region13
    $region12: #{tpu_custom_call.1} parent=1 // pred_region
      %25 = dma.done [#allocation4], 4096
    $region13: #{tpu_custom_call.1} parent=1 // pred_fallthru
      _
    %p26 = scmp.eq.s32.totalorder 0, 0
    // Predicated region
    $region14: #{tpu_custom_call.1} parent=1 // pred_check
      %p27 = pneg %p26
    $region15: #{tpu_custom_call.1} parent=1 // pred_check_branch
      %29 = sbr.rel (%p27) target = $region17
    $region16: #{tpu_custom_call.1} parent=1 // pred_region
      %30 = vst [vmem:[#allocation2] sm:$0xff] 0.0
      %31 = vst [vmem:[#allocation2 + $0x8] sm:$0xff] 0.0
    $region17: #{tpu_custom_call.1} parent=1 // pred_fallthru
      _
    %s32 = smul.u32 0, 256
    %v33 = vlaneseq
    %v34 = vand.u32 %v33, 127
    %v35 = vadd.s32 %v34, 128
    %v36 = vstv %s32
    %v37 = vadd.s32 %v36, %v34
    %v38 = vadd.s32 %v36, %v35
    %v39 = vld [vmem:[%s0] sm:$0xff]
    %v40 = vld [vmem:[%s0 + $0x8] sm:$0xff]
    %41 = vset.pattern.permute.xlu0 0
    %42 = vperm.xlu0 %41, %v39
    %v43 = vpop.permute.xlu0 %42
    %44 = vset.pattern.permute.xlu0 0
    %45 = vperm.xlu0 %44, %v40
    %v46 = vpop.permute.xlu0 %45
    %vm47 = vcmp.eq.s32.totalorder %v37, %v43
    %vm48 = vcmp.eq.s32.totalorder %v38, %v43
    %vm49 = vcmp.eq.s32.totalorder %v37, %v46
    %vm50 = vcmp.eq.s32.totalorder %v38, %v46
    %v51 = vsel %vm47, 0.5, 0.0
    %v52 = vsel %vm48, 0.5, 0.0
    %v53 = vsel %vm49, 0.5, 0.0
    %v54 = vsel %vm50, 0.5, 0.0
    %55 = vset.pattern.permute.xlu0 1
    %56 = vperm.xlu0 %55, %v39
    %v57 = vpop.permute.xlu0 %56
    %58 = vset.pattern.permute.xlu0 1
    %59 = vperm.xlu0 %58, %v40
    %v60 = vpop.permute.xlu0 %59
    %vm61 = vcmp.eq.s32.totalorder %v37, %v57
    %vm62 = vcmp.eq.s32.totalorder %v38, %v57
    %vm63 = vcmp.eq.s32.totalorder %v37, %v60
    %vm64 = vcmp.eq.s32.totalorder %v38, %v60
    %v65 = vadd.f32 %v51, 0.5
    %v66 = vadd.f32 %v52, 0.5
    %v67 = vadd.f32 %v53, 0.5
    %v68 = vadd.f32 %v54, 0.5
    %v69 = vsel %vm61, %v65, %v51
    %v70 = vsel %vm62, %v66, %v52
    %v71 = vsel %vm63, %v67, %v53
    %v72 = vsel %vm64, %v68, %v54
    %v73 = vld [vmem:[#allocation3] sm:$0xff]
    %v74 = vld [vmem:[#allocation3 + $0x8] sm:$0xff]
    %v75 = vld [vmem:[#allocation3 + $0x10] sm:$0xff]
    %v76 = vld [vmem:[#allocation3 + $0x18] sm:$0xff]
    %v77 = vld [vmem:[#allocation3 + $0x20] sm:$0xff]
    %v78 = vld [vmem:[#allocation3 + $0x28] sm:$0xff]
    %v79 = vld [vmem:[#allocation3 + $0x30] sm:$0xff]
    %v80 = vld [vmem:[#allocation3 + $0x38] sm:$0xff]
    %v81 = vld [vmem:[#allocation3 + $0x40] sm:$0xff]
    %v82 = vld [vmem:[#allocation3 + $0x48] sm:$0xff]
    %v83 = vld [vmem:[#allocation3 + $0x50] sm:$0xff]
    %v84 = vld [vmem:[#allocation3 + $0x58] sm:$0xff]
    %v85 = vld [vmem:[#allocation3 + $0x60] sm:$0xff]
    %v86 = vld [vmem:[#allocation3 + $0x68] sm:$0xff]
    %v87 = vld [vmem:[#allocation3 + $0x70] sm:$0xff]
    %v88 = vld [vmem:[#allocation3 + $0x78] sm:$0xff]
    %v89 = vld [vmem:[#allocation3 + $0x80] sm:$0xff]
    %v90 = vld [vmem:[#allocation3 + $0x88] sm:$0xff]
    %v91 = vld [vmem:[#allocation3 + $0x90] sm:$0xff]
    %v92 = vld [vmem:[#allocation3 + $0x98] sm:$0xff]
    %v93 = vld [vmem:[#allocation3 + $0xa0] sm:$0xff]
    %v94 = vld [vmem:[#allocation3 + $0xa8] sm:$0xff]
    %v95 = vld [vmem:[#allocation3 + $0xb0] sm:$0xff]
    %v96 = vld [vmem:[#allocation3 + $0xb8] sm:$0xff]
    %v97 = vld [vmem:[#allocation3 + $0xc0] sm:$0xff]
    %v98 = vld [vmem:[#allocation3 + $0xc8] sm:$0xff]
    %v99 = vld [vmem:[#allocation3 + $0xd0] sm:$0xff]
    %v100 = vld [vmem:[#allocation3 + $0xd8] sm:$0xff]
    %v101 = vld [vmem:[#allocation3 + $0xe0] sm:$0xff]
    %v102 = vld [vmem:[#allocation3 + $0xe8] sm:$0xff]
    %v103 = vld [vmem:[#allocation3 + $0xf0] sm:$0xff]
    %v104 = vld [vmem:[#allocation3 + $0xf8] sm:$0xff]
    %v105 = vld [vmem:[#allocation2] sm:$0xff]
    %v106 = vld [vmem:[#allocation2 + $0x8] sm:$0xff]
    %107 = vmatprep.subr.mxu0 0.0
    %108 = vmatpush1.msra.mxu0 %v73
    %109 = vmatprep.subr.mxu0 0.0
    %110 = vmatpush1.msra.mxu0 %v74
    %111 = vmatprep.subr.mxu0 0.0
    %112 = vmatpush1.msra.mxu0 %v75
    %113 = vmatprep.subr.mxu0 0.0
    %114 = vmatpush1.msra.mxu0 %v76
    %115 = vmatprep.subr.mxu0 0.0
    %116 = vmatpush1.msra.mxu0 %v77
    %117 = vmatprep.subr.mxu0 0.0
    %118 = vmatpush1.msra.mxu0 %v78
    %119 = vmatprep.subr.mxu0 0.0
    %120 = vmatpush1.msra.mxu0 %v79
    %121 = vmatprep.subr.mxu0 0.0
    %122 = vmatpush1.msra.mxu0 %v80
    %123 = vmatprep.subr.mxu0 0.0
    %124 = vmatpush1.msra.mxu0 %v81
    %125 = vmatprep.subr.mxu0 0.0
    %126 = vmatpush1.msra.mxu0 %v82
    %127 = vmatprep.subr.mxu0 0.0
    %128 = vmatpush1.msra.mxu0 %v83
    %129 = vmatprep.subr.mxu0 0.0
    %130 = vmatpush1.msra.mxu0 %v84
    %131 = vmatprep.subr.mxu0 0.0
    %132 = vmatpush1.msra.mxu0 %v85
    %133 = vmatprep.subr.mxu0 0.0
    %134 = vmatpush1.msra.mxu0 %v86
    %135 = vmatprep.subr.mxu0 0.0
    %136 = vmatpush1.msra.mxu0 %v87
    %137 = vmatprep.subr.mxu0 0.0
    %138 = vmatpush1.msra.mxu0 %v88
    %139 = vmatprep.subr.mxu0 0.0
    %140 = vmatpush1.msra.mxu0 %v89
    %141 = vmatprep.subr.mxu0 0.0
    %142 = vmatpush1.msra.mxu0 %v90
    %143 = vmatprep.subr.mxu0 0.0
    %144 = vmatpush1.msra.mxu0 %v91
    %145 = vmatprep.subr.mxu0 0.0
    %146 = vmatpush1.msra.mxu0 %v92
    %147 = vmatprep.subr.mxu0 0.0
    %148 = vmatpush1.msra.mxu0 %v93
    %149 = vmatprep.subr.mxu0 0.0
    %150 = vmatpush1.msra.mxu0 %v94
    %151 = vmatprep.subr.mxu0 0.0
    %152 = vmatpush1.msra.mxu0 %v95
    %153 = vmatprep.subr.mxu0 0.0
    %154 = vmatpush1.msra.mxu0 %v96
    %155 = vmatprep.subr.mxu0 0.0
    %156 = vmatpush1.msra.mxu0 %v97
    %157 = vmatprep.subr.mxu0 0.0
    %158 = vmatpush1.msra.mxu0 %v98
    %159 = vmatprep.subr.mxu0 0.0
    %160 = vmatpush1.msra.mxu0 %v99
    %161 = vmatprep.subr.mxu0 0.0
    %162 = vmatpush1.msra.mxu0 %v100
    %163 = vmatprep.subr.mxu0 0.0
    %164 = vmatpush1.msra.mxu0 %v101
    %165 = vmatprep.subr.mxu0 0.0
    %166 = vmatpush1.msra.mxu0 %v102
    %167 = vmatprep.subr.mxu0 0.0
    %168 = vmatpush1.msra.mxu0 %v103
    %169 = vmatprep.subr.mxu0 0.0
    %170 = vmatpush1.msra.mxu0 %v104
    %171 = vmatprep.mubr.f32.mxu0 %v70
    %172 = vmatmul.mubr.f32.gmra.mrb[0].mxu0 %v69
    %v173 = vpop.f32.mrb[0].mxu0
    %v174 = vadd.f32 0.0, %v173
    %v175 = vpop.f32.mrb[0].mxu0
    %176 = vmatprep.mubr.f32.mxu0 %v72
    %177 = vmatmul.mubr.f32.gmra.mrb[0].mxu0 %v71
    %v178 = vpop.f32.mrb[0].mxu0
    %v179 = vadd.f32 0.0, %v178
    %v180 = vpop.f32.mrb[0].mxu0
    %181 = vdwg.mxu0
    %v182 = vadd.f32 %v105, %v174
    %v183 = vadd.f32 %v106, %v179
    %184 = vst [vmem:[#allocation2] sm:$0xff] %v182
    %185 = vst [vmem:[#allocation2 + $0x8] sm:$0xff] %v183
    // Predicated region
    $region18: #{tpu_custom_call.1} parent=1 // pred_check
      %p186 = pneg %p26
    $region19: #{tpu_custom_call.1} parent=1 // pred_check_branch
      %188 = sbr.rel (%p186) target = $region21
    $region20: #{tpu_custom_call.1} parent=1 // pred_region
      %v189 = vld [vmem:[#allocation2] sm:$0xff]
      %v190 = vld [vmem:[#allocation2 + $0x8] sm:$0xff]
      %191 = vst [vmem:[#allocation6] sm:$0xff] %v189
      %192 = vst [vmem:[#allocation6 + $0x8] sm:$0xff] %v190
    $region21: #{tpu_custom_call.1} parent=1 // pred_fallthru
      _
    // Predicated region
    $region22: #{tpu_custom_call.1} parent=1 // pred_check
      _
    $region23: #{tpu_custom_call.1} parent=1 // pred_check_branch
      %194 = sbr.rel (0) target = $region25
    $region24: #{tpu_custom_call.1} parent=1 // pred_region
      %s196 = ssub.s32 256, 256
      %197 = vsyncadd [#allocation5], %s196
      %s198 = sshll.u32 [#allocation6], 4
      %s199 = int_to_ptr.vmem [resolvable:$true] %s198
      %204 = dma.vmem_to_hbm [thread:$0]  %s199, 256, %s2, [#allocation5], 128, 128, 8
    $region25: #{tpu_custom_call.1} parent=1 // pred_fallthru
      _
    // Predicated region
    $region26: #{tpu_custom_call.1} parent=1 // pred_check
      _
    $region27: #{tpu_custom_call.1} parent=1 // pred_check_branch
      %206 = sbr.rel (0) target = $region29
    $region28: #{tpu_custom_call.1} parent=1 // pred_region
      %207 = dma.done [#allocation5], 256
    $region29: #{tpu_custom_call.1} parent=1 // pred_fallthru
      _
    %208 = vsyncpa [#allocation4], 1
    %209 = vsyncpa [#allocation5], 1

</llo_original>
